<compile_context>
chip_gen: v5e
topology: v5e:2x2
jax: 0.10.0
libtpu: 0.0.40
codegen_flags: <defaults>
</compile_context>

<pallas_src>
import jax
import jax.numpy as jnp
from jax.experimental import pallas as pl
from jax.experimental.pallas import tpu as pltpu


def _round_up(n: int, m: int) -> int:
    return ((n + m - 1) // m) * m


def _vmem_capacity_bytes() -> int:
    """Per-TensorCore VMEM capacity; conservative v7x default if unknown."""
    try:
        info = pltpu.get_tpu_info()
        cap = getattr(info, "vmem_capacity_bytes", None)
        if cap:
            return int(cap)
    except Exception:
        pass
    return 64 << 20


# ---------------------------------------------------------------------------
# Kernel
# ---------------------------------------------------------------------------

def gated_head_kernel(x_ref, w_ref, b_ref, o_ref):
    """One (batch tile, class tile): two MXU matmuls + bias + sigmoid gating."""
    x = x_ref[...]                                               # (TB, F)
    act = jnp.dot(x, w_ref[0], preferred_element_type=jnp.float32) + b_ref[0]
    gate = jnp.dot(x, w_ref[1], preferred_element_type=jnp.float32) + b_ref[1]
    # sigmoid(a) * sigmoid(g) == 1 / ((1 + e^-a) * (1 + e^-g)); one approx
    # reciprocal on the EUP instead of two exact ones.
    denom = (1.0 + jnp.exp(-act)) * (1.0 + jnp.exp(-gate))       # f32 (TB, TN)
    o_ref[...] = pl.reciprocal(denom, approx=True).astype(o_ref.dtype)


# ---------------------------------------------------------------------------
# Tiling / VMEM accounting
# ---------------------------------------------------------------------------

def _choose_tiles(B, F, Cp, in_bytes, out_bytes, capacity):
    """Pick (batch tile, class tile) whose working set fits the VMEM budget."""
    budget = max(24 << 20, min(int(0.75 * capacity), capacity - (8 << 20)))
    scratch = 4 << 20                       # Mosaic internal scratch headroom

    def working_set(tb, tn, w_bufs):
        weights = w_bufs * (2 * F * tn * in_bytes + 2 * tn * 4)   # W + bias
        stream = 2 * tb * F * in_bytes + 2 * tb * tn * out_bytes  # x/out, 2 bufs
        epi = 4 * tb * tn * 4                                     # f32 temporaries
        return weights + stream + epi

    B8 = _round_up(max(B, 1), 8)
    # Batch tile capped at 512: per-step overhead is amortized by then and
    # bigger tiles only inflate the live f32 epilogue data / spill pressure.
    tb_cands = [t for t in (512, 256, 128, 64, 32, 16, 8) if t <= max(B8, 8)]
    if not tb_cands:
        tb_cands = [8]
    n_blocks = Cp // 128
    tn_cands = sorted({d * 128 for d in range(1, n_blocks + 1)
                       if Cp % (d * 128) == 0}, reverse=True)

    choice = None
    for tn in tn_cands:
        w_bufs = 1 if tn == Cp else 2       # grid-invariant weights -> 1 buffer
        for tb in tb_cands:
            if working_set(tb, tn, w_bufs) + scratch <= budget:
                choice = (tb, tn)
                break
        if choice is not None:
            break
    if choice is None:
        # TODO(synk): huge-F heads need a K reduction grid axis; minimal tiles.
        choice = (8, 128)
    tb, tn = choice

    # Megacore: if only one batch tile, split Cp so the grid has >= 2 parallel
    # steps (keeps both v7x TensorCores busy at small batch sizes).
    if _round_up(B8, tb) // tb < 2 and tn == Cp and Cp >= 256:
        for tn2 in tn_cands:
            if tn2 < Cp and working_set(tb, tn2, 2) + scratch <= budget:
                tn = tn2
                break
    return tb, tn


# ---------------------------------------------------------------------------
# Parameter packing (do this once at load time, not per forward call)
# ---------------------------------------------------------------------------

def pack_gated_head_params(w, b, num_classes, compute_dtype=jnp.bfloat16):
    """Pack torch-layout Linear params into kernel layout.

    w: (2C, F), b: (2C,)  ->  w_packed: (2, F, Cp) compute_dtype,
                              b_packed: (2, 1, Cp) f32,   Cp = round_up(C, 128).
    Padded columns are zero (their sigmoid(0)*sigmoid(0) values are sliced off).
    """
    C = num_classes
    F = w.shape[1]
    assert w.shape == (2 * C, F) and b.shape == (2 * C,)
    compute_dtype = jnp.dtype(compute_dtype)
    Cp = _round_up(max(C, 1), 128)

    w_packed = jnp.zeros((2, F, Cp), compute_dtype)
    w_packed = w_packed.at[0, :, :C].set(w[:C].T.astype(compute_dtype))
    w_packed = w_packed.at[1, :, :C].set(w[C:].T.astype(compute_dtype))
    b_packed = jnp.zeros((2, 1, Cp), jnp.float32)
    b_packed = b_packed.at[0, 0, :C].set(b[:C].astype(jnp.float32))
    b_packed = b_packed.at[1, 0, :C].set(b[C:].astype(jnp.float32))
    return w_packed, b_packed


# ---------------------------------------------------------------------------
# Forward pass
# ---------------------------------------------------------------------------

_SINGLE_BUFFER_WEIGHTS_OK = True  # set False if pl.Buffered(1) is rejected


def _build_specs(TB, F, TN, single_buffer_weights):
    x_spec = pl.BlockSpec((TB, F), lambda i, j: (i, 0))
    if single_buffer_weights:
        w_spec = pl.BlockSpec((2, F, TN), lambda i, j: (0, 0, j),
                              pipeline_mode=pl.Buffered(1))
        b_spec = pl.BlockSpec((2, 1, TN), lambda i, j: (0, 0, j),
                              pipeline_mode=pl.Buffered(1))
    else:
        w_spec = pl.BlockSpec((2, F, TN), lambda i, j: (0, 0, j))
        b_spec = pl.BlockSpec((2, 1, TN), lambda i, j: (0, 0, j))
    out_spec = pl.BlockSpec((TB, TN), lambda i, j: (i, j))
    return [x_spec, w_spec, b_spec], out_spec


def gated_head_packed(x, w_packed, b_packed, num_classes):
    """GatedHead forward from pre-packed params. x: (B, F) -> (B, C) in x.dtype."""
    global _SINGLE_BUFFER_WEIGHTS_OK

    B, F = x.shape
    C = num_classes
    two, Fw, Cp = w_packed.shape
    assert two == 2 and Fw == F and b_packed.shape == (2, 1, Cp)

    compute_dtype = w_packed.dtype
    out_dtype = x.dtype
    in_bytes = jnp.dtype(compute_dtype).itemsize
    out_bytes = jnp.dtype(out_dtype).itemsize

    capacity = _vmem_capacity_bytes()
    TB, TN = _choose_tiles(B, F, Cp, in_bytes, out_bytes, capacity)

    # Only cast / pad x when actually needed (single fused pass if both).
    Bp = _round_up(B, TB)
    if x.dtype != compute_dtype:
        x = x.astype(compute_dtype)
    if Bp != B:
        x = jnp.pad(x, ((0, Bp - B), (0, 0)))

    nb = Bp // TB
    nn = Cp // TN
    grid = (nb, nn)

    cost = pl.CostEstimate(
        flops=4 * Bp * F * Cp,                 # two (TB,F)@(F,TN) matmuls per elem
        transcendentals=3 * Bp * Cp,           # 2 exp + 1 approx reciprocal
        bytes_accessed=(Bp * F * in_bytes + 2 * F * Cp * in_bytes
                        + 2 * Cp * 4 + Bp * Cp * out_bytes),
    )

    def run(single_buffer):
        w_bufs = 1 if single_buffer else 2
        working = (w_bufs * (2 * F * TN * in_bytes + 2 * TN * 4)
                   + 2 * TB * F * in_bytes + 2 * TB * TN * out_bytes
                   + 4 * TB * TN * 4)
        vmem_limit = int(min(capacity - (8 << 20),
                             max(16 << 20, working + (6 << 20))))
        in_specs, out_spec = _build_specs(TB, F, TN, single_buffer)
        return pl.pallas_call(
            gated_head_kernel,
            out_shape=jax.ShapeDtypeStruct((Bp, Cp), out_dtype),
            grid=grid,
            in_specs=in_specs,
            out_specs=out_spec,
            compiler_params=pltpu.CompilerParams(
                dimension_semantics=("parallel", "parallel"),
                vmem_limit_bytes=vmem_limit,
            ),
            cost_estimate=cost,
        )(x, w_packed, b_packed)

    out_padded = None
    if nn == 1 and _SINGLE_BUFFER_WEIGHTS_OK:
        # Grid-invariant weight/bias blocks: double-buffering them only burns
        # VMEM, so request a single buffer.  Fall back if lowering rejects it.
        try:
            out_padded = run(True)
        except Exception:
            _SINGLE_BUFFER_WEIGHTS_OK = False
    if out_padded is None:
        out_padded = run(False)

    if Bp == B and Cp == C:
        return out_padded
    return out_padded[:B, :C]


def gated_head(x, w, b, num_classes, *, compute_dtype=jnp.bfloat16):
    """Convenience wrapper: pack params then run the kernel.

    For repeated inference/training steps, call pack_gated_head_params() once
    and use gated_head_packed() directly to avoid re-packing the weights.
    """
    w_packed, b_packed = pack_gated_head_params(w, b, num_classes, compute_dtype)
    return gated_head_packed(x, w_packed, b_packed, num_classes)


def reference(x, w, b, num_classes):
    z = x @ w.T + b
    return jax.nn.sigmoid(z[:, :num_classes]) * jax.nn.sigmoid(z[:, num_classes:])


if __name__ == "__main__":
    # Small, deterministic shapes consistent with the module.
    batch = 2
    num_features = 32
    num_classes = 8

    key = jax.random.PRNGKey(0)
    kx, kw, kb = jax.random.split(key, 3)

    x = jax.random.normal(kx, (batch, num_features), dtype=jnp.float32)

    # Deterministic parameter init mimicking torch.nn.Linear (uniform +/- 1/sqrt(F)).
    bound = 1.0 / (num_features ** 0.5)
    w = jax.random.uniform(kw, (2 * num_classes, num_features),
                           minval=-bound, maxval=bound, dtype=jnp.float32)
    b = jax.random.uniform(kb, (2 * num_classes,),
                           minval=-bound, maxval=bound, dtype=jnp.float32)

    ref = reference(x, w, b, num_classes)

    # Default path: bf16 compute (f32 accumulation + f32 epilogue).
    out = jax.block_until_ready(gated_head(x, w, b, num_classes))
    assert out.shape == (batch, num_classes)
    assert jnp.allclose(out, ref, atol=2e-2, rtol=2e-2), "bf16 path mismatch vs reference"

    # f32 compute path (tighter tolerance; approx reciprocal in the epilogue).
    out_f32 = jax.block_until_ready(
        gated_head(x, w, b, num_classes, compute_dtype=jnp.float32))
    assert out_f32.shape == (batch, num_classes)
    assert jnp.allclose(out_f32, ref, atol=1e-2, rtol=1e-2), "f32 path mismatch vs reference"

    print("KERNEL_OK")
</pallas_src>

<mosaic_0001>
module attributes {stable_mosaic.version = 11 : i64} {
  func.func @gated_head_kernel(%arg0: i32, %arg1: i32, %arg2: memref<8x32xbf16, #tpu.memory_space<vmem>>, %arg3: memref<2x32x128xbf16, #tpu.memory_space<vmem>>, %arg4: memref<2x1x128xf32, #tpu.memory_space<vmem>>, %arg5: memref<8x128xf32, #tpu.memory_space<vmem>>) attributes {dimension_semantics = [#tpu.dimension_semantics<parallel>, #tpu.dimension_semantics<parallel>], iteration_bounds = array<i64: 1, 1>, scalar_prefetch = 0 : i64, scratch_operands = 0 : i64, tpu.core_type = #tpu.core_type<tc>, window_params = [{transform_indices = @transform_0, window_bounds = array<i64: 8, 32>}, {pipeline_mode = #tpu.pipeline_mode<synchronous>, transform_indices = @transform_1, window_bounds = array<i64: 2, 32, 128>}, {pipeline_mode = #tpu.pipeline_mode<synchronous>, transform_indices = @transform_2, window_bounds = array<i64: 2, 1, 128>}, {transform_indices = @transform_3, window_bounds = array<i64: 8, 128>}]} {
    %c0 = arith.constant 0 : index
    %c0_0 = arith.constant 0 : index
    %0 = vector.load %arg2[%c0, %c0_0] : memref<8x32xbf16, #tpu.memory_space<vmem>>, vector<8x32xbf16>
    %c0_1 = arith.constant 0 : index
    %c0_2 = arith.constant 0 : index
    %c0_3 = arith.constant 0 : index
    %1 = vector.load %arg3[%c0_1, %c0_2, %c0_3] : memref<2x32x128xbf16, #tpu.memory_space<vmem>>, vector<1x32x128xbf16>
    %2 = vector.shape_cast %1 : vector<1x32x128xbf16> to vector<32x128xbf16>
    %cst = arith.constant dense<0.000000e+00> : vector<8x128xf32>
    %3 = tpu.matmul %0, %2, %cst {dimension_numbers = #tpu.dot_dimension_numbers<[1], [0], [0], [1], [0, 0, 1, 1], [], []>} : vector<8x32xbf16>, vector<32x128xbf16>, vector<8x128xf32> -> vector<8x128xf32>
    %c0_4 = arith.constant 0 : index
    %c0_5 = arith.constant 0 : index
    %c0_6 = arith.constant 0 : index
    %4 = vector.load %arg4[%c0_4, %c0_5, %c0_6] : memref<2x1x128xf32, #tpu.memory_space<vmem>>, vector<1x1x128xf32>
    %5 = vector.shape_cast %4 : vector<1x1x128xf32> to vector<1x128xf32>
    %6 = vector.broadcast %5 : vector<1x128xf32> to vector<8x128xf32>
    %7 = arith.addf %3, %6 : vector<8x128xf32>
    %c1 = arith.constant 1 : index
    %c0_7 = arith.constant 0 : index
    %c0_8 = arith.constant 0 : index
    %8 = vector.load %arg3[%c1, %c0_7, %c0_8] : memref<2x32x128xbf16, #tpu.memory_space<vmem>>, vector<1x32x128xbf16>
    %9 = vector.shape_cast %8 : vector<1x32x128xbf16> to vector<32x128xbf16>
    %cst_9 = arith.constant dense<0.000000e+00> : vector<8x128xf32>
    %10 = tpu.matmul %0, %9, %cst_9 {dimension_numbers = #tpu.dot_dimension_numbers<[1], [0], [0], [1], [0, 0, 1, 1], [], []>} : vector<8x32xbf16>, vector<32x128xbf16>, vector<8x128xf32> -> vector<8x128xf32>
    %c1_10 = arith.constant 1 : index
    %c0_11 = arith.constant 0 : index
    %c0_12 = arith.constant 0 : index
    %11 = vector.load %arg4[%c1_10, %c0_11, %c0_12] : memref<2x1x128xf32, #tpu.memory_space<vmem>>, vector<1x1x128xf32>
    %12 = vector.shape_cast %11 : vector<1x1x128xf32> to vector<1x128xf32>
    %13 = vector.broadcast %12 : vector<1x128xf32> to vector<8x128xf32>
    %14 = arith.addf %10, %13 : vector<8x128xf32>
    %cst_13 = arith.constant 0.000000e+00 : f32
    %15 = vector.broadcast %cst_13 : f32 to vector<8x128xf32>
    %16 = arith.subf %15, %7 : vector<8x128xf32>
    %17 = math.exp %16 : vector<8x128xf32>
    %cst_14 = arith.constant 1.000000e+00 : f32
    %18 = vector.broadcast %cst_14 : f32 to vector<8x128xf32>
    %19 = arith.addf %18, %17 : vector<8x128xf32>
    %cst_15 = arith.constant 0.000000e+00 : f32
    %20 = vector.broadcast %cst_15 : f32 to vector<8x128xf32>
    %21 = arith.subf %20, %14 : vector<8x128xf32>
    %22 = math.exp %21 : vector<8x128xf32>
    %cst_16 = arith.constant 1.000000e+00 : f32
    %23 = vector.broadcast %cst_16 : f32 to vector<8x128xf32>
    %24 = arith.addf %23, %22 : vector<8x128xf32>
    %25 = arith.mulf %19, %24 : vector<8x128xf32>
    %26 = tpu.reciprocal %25 {approx = true} : vector<8x128xf32> -> vector<8x128xf32>
    %c0_17 = arith.constant 0 : index
    %c0_18 = arith.constant 0 : index
    %27 = vector.load %arg5[%c0_17, %c0_18] : memref<8x128xf32, #tpu.memory_space<vmem>>, vector<8x128xf32>
    tpu.vector_store %arg5[%c0_17, %c0_18], %26 {strides = array<i32>} : memref<8x128xf32, #tpu.memory_space<vmem>>, vector<8x128xf32>,
    return
  }
  func.func @transform_0(%arg0: i32, %arg1: i32) -> (i32, i32) {
    %c0_i32 = arith.constant 0 : i32
    %c0_i32_0 = arith.constant 0 : i32
    return %arg0, %c0_i32 : i32, i32
  }
  func.func @transform_1(%arg0: i32, %arg1: i32) -> (i32, i32, i32) {
    %c0_i32 = arith.constant 0 : i32
    %c0_i32_0 = arith.constant 0 : i32
    %c0_i32_1 = arith.constant 0 : i32
    return %c0_i32, %c0_i32_0, %arg1 : i32, i32, i32
  }
  func.func @transform_2(%arg0: i32, %arg1: i32) -> (i32, i32, i32) {
    %c0_i32 = arith.constant 0 : i32
    %c0_i32_0 = arith.constant 0 : i32
    %c0_i32_1 = arith.constant 0 : i32
    return %c0_i32, %c0_i32_0, %arg1 : i32, i32, i32
  }
  func.func @transform_3(%arg0: i32, %arg1: i32) -> (i32, i32) {
    %c0_i32 = arith.constant 0 : i32
    return %arg0, %arg1 : i32, i32
  }
}

module attributes {stable_mosaic.version = 11 : i64} {
  func.func @gated_head_kernel(%arg0: i32, %arg1: i32, %arg2: memref<8x32xbf16, #tpu.memory_space<vmem>>, %arg3: memref<2x32x128xbf16, #tpu.memory_space<vmem>>, %arg4: memref<2x1x128xf32, #tpu.memory_space<vmem>>, %arg5: memref<8x128xf32, #tpu.memory_space<vmem>>) attributes {dimension_semantics = [#tpu.dimension_semantics<parallel>, #tpu.dimension_semantics<parallel>], iteration_bounds = array<i64: 1, 1>, scalar_prefetch = 0 : i64, scratch_operands = 0 : i64, tpu.core_type = #tpu.core_type<tc>, window_params = [{transform_indices = @transform_0, window_bounds = array<i64: 8, 32>}, {transform_indices = @transform_1, window_bounds = array<i64: 2, 32, 128>}, {transform_indices = @transform_2, window_bounds = array<i64: 2, 1, 128>}, {transform_indices = @transform_3, window_bounds = array<i64: 8, 128>}]} {
    %c0 = arith.constant 0 : index
    %c0_0 = arith.constant 0 : index
    %0 = vector.load %arg2[%c0, %c0_0] : memref<8x32xbf16, #tpu.memory_space<vmem>>, vector<8x32xbf16>
    %c0_1 = arith.constant 0 : index
    %c0_2 = arith.constant 0 : index
    %c0_3 = arith.constant 0 : index
    %1 = vector.load %arg3[%c0_1, %c0_2, %c0_3] : memref<2x32x128xbf16, #tpu.memory_space<vmem>>, vector<1x32x128xbf16>
    %2 = vector.shape_cast %1 : vector<1x32x128xbf16> to vector<32x128xbf16>
    %cst = arith.constant dense<0.000000e+00> : vector<8x128xf32>
    %3 = tpu.matmul %0, %2, %cst {dimension_numbers = #tpu.dot_dimension_numbers<[1], [0], [0], [1], [0, 0, 1, 1], [], []>} : vector<8x32xbf16>, vector<32x128xbf16>, vector<8x128xf32> -> vector<8x128xf32>
    %c0_4 = arith.constant 0 : index
    %c0_5 = arith.constant 0 : index
    %c0_6 = arith.constant 0 : index
    %4 = vector.load %arg4[%c0_4, %c0_5, %c0_6] : memref<2x1x128xf32, #tpu.memory_space<vmem>>, vector<1x1x128xf32>
    %5 = vector.shape_cast %4 : vector<1x1x128xf32> to vector<1x128xf32>
    %6 = vector.broadcast %5 : vector<1x128xf32> to vector<8x128xf32>
    %7 = arith.addf %3, %6 : vector<8x128xf32>
    %c1 = arith.constant 1 : index
    %c0_7 = arith.constant 0 : index
    %c0_8 = arith.constant 0 : index
    %8 = vector.load %arg3[%c1, %c0_7, %c0_8] : memref<2x32x128xbf16, #tpu.memory_space<vmem>>, vector<1x32x128xbf16>
    %9 = vector.shape_cast %8 : vector<1x32x128xbf16> to vector<32x128xbf16>
    %cst_9 = arith.constant dense<0.000000e+00> : vector<8x128xf32>
    %10 = tpu.matmul %0, %9, %cst_9 {dimension_numbers = #tpu.dot_dimension_numbers<[1], [0], [0], [1], [0, 0, 1, 1], [], []>} : vector<8x32xbf16>, vector<32x128xbf16>, vector<8x128xf32> -> vector<8x128xf32>
    %c1_10 = arith.constant 1 : index
    %c0_11 = arith.constant 0 : index
    %c0_12 = arith.constant 0 : index
    %11 = vector.load %arg4[%c1_10, %c0_11, %c0_12] : memref<2x1x128xf32, #tpu.memory_space<vmem>>, vector<1x1x128xf32>
    %12 = vector.shape_cast %11 : vector<1x1x128xf32> to vector<1x128xf32>
    %13 = vector.broadcast %12 : vector<1x128xf32> to vector<8x128xf32>
    %14 = arith.addf %10, %13 : vector<8x128xf32>
    %cst_13 = arith.constant 0.000000e+00 : f32
    %15 = vector.broadcast %cst_13 : f32 to vector<8x128xf32>
    %16 = arith.subf %15, %7 : vector<8x128xf32>
    %17 = math.exp %16 : vector<8x128xf32>
    %cst_14 = arith.constant 1.000000e+00 : f32
    %18 = vector.broadcast %cst_14 : f32 to vector<8x128xf32>
    %19 = arith.addf %18, %17 : vector<8x128xf32>
    %cst_15 = arith.constant 0.000000e+00 : f32
    %20 = vector.broadcast %cst_15 : f32 to vector<8x128xf32>
    %21 = arith.subf %20, %14 : vector<8x128xf32>
    %22 = math.exp %21 : vector<8x128xf32>
    %cst_16 = arith.constant 1.000000e+00 : f32
    %23 = vector.broadcast %cst_16 : f32 to vector<8x128xf32>
    %24 = arith.addf %23, %22 : vector<8x128xf32>
    %25 = arith.mulf %19, %24 : vector<8x128xf32>
    %26 = tpu.reciprocal %25 {approx = true} : vector<8x128xf32> -> vector<8x128xf32>
    %c0_17 = arith.constant 0 : index
    %c0_18 = arith.constant 0 : index
    %27 = vector.load %arg5[%c0_17, %c0_18] : memref<8x128xf32, #tpu.memory_space<vmem>>, vector<8x128xf32>
    tpu.vector_store %arg5[%c0_17, %c0_18], %26 {strides = array<i32>} : memref<8x128xf32, #tpu.memory_space<vmem>>, vector<8x128xf32>,
    return
  }
  func.func @transform_0(%arg0: i32, %arg1: i32) -> (i32, i32) {
    %c0_i32 = arith.constant 0 : i32
    %c0_i32_0 = arith.constant 0 : i32
    return %arg0, %c0_i32 : i32, i32
  }
  func.func @transform_1(%arg0: i32, %arg1: i32) -> (i32, i32, i32) {
    %c0_i32 = arith.constant 0 : i32
    %c0_i32_0 = arith.constant 0 : i32
    %c0_i32_1 = arith.constant 0 : i32
    return %c0_i32, %c0_i32_0, %arg1 : i32, i32, i32
  }
  func.func @transform_2(%arg0: i32, %arg1: i32) -> (i32, i32, i32) {
    %c0_i32 = arith.constant 0 : i32
    %c0_i32_0 = arith.constant 0 : i32
    %c0_i32_1 = arith.constant 0 : i32
    return %c0_i32, %c0_i32_0, %arg1 : i32, i32, i32
  }
  func.func @transform_3(%arg0: i32, %arg1: i32) -> (i32, i32) {
    %c0_i32 = arith.constant 0 : i32
    return %arg0, %arg1 : i32, i32
  }
}

</mosaic_0001>

<llo_original>
// kernel: tpu_custom_call.1
$region0: #{tpu_custom_call.1}
  #allocation0 [shape = 'u32[]', space=smem, size = 0x4, offset = 0x4, fixed_abs, tag = 'smem constant byte address 0x4 - core index']
  #allocation1 [shape = 'u32[72,128]{1,0:T(1,128)}', space=vmem, size = 0x9000, scoped, tag = 'internal scratch']
  %s0 = inlined_call_operand.hbm [shape: bf16[8,32], index: 0, kind: input, shape index: {}]
  %s1 = inlined_call_operand.hbm [shape: bf16[2,32,128], index: 1, kind: input, shape index: {}]
  %s2 = inlined_call_operand.hbm [shape: f32[2,1,128], index: 2, kind: input, shape index: {}]
  %s3 = inlined_call_operand.hbm [shape: f32[8,128], index: 3, kind: output, shape index: {}]
  %s4 = sld [smem:[#allocation0]]
  $region34: #{tpu_custom_call.1} parent=0
    _
  %s6 = ssub.s32 1, %s4
  %s7 = scalar_select 0, %s6, %s4
  $region1: #{tpu_custom_call.1} parent=0
    #allocation2 [shape = 'u8[2048]{0}', space=vmem, size = 0x800, scoped, tag = 'input window, operand 0, single buffered']
    #allocation3 [shape = 's32[1]{0}', space=sflag, size = 0x4, scoped, tag = 'scoped memory for tpu_custom_call.1']
    #allocation4 [shape = 's32[1]{0}', space=sflag, size = 0x4, scoped, tag = 'scoped memory for tpu_custom_call.1']
    #allocation5 [shape = 'u8[16384]{0}', space=vmem, size = 0x4000, scoped, tag = 'input window, operand 1, single buffered']
    #allocation6 [shape = 's32[1]{0}', space=sflag, size = 0x4, scoped, tag = 'scoped memory for tpu_custom_call.1']
    #allocation7 [shape = 'u8[1024]{0}', space=vmem, size = 0x400, scoped, tag = 'input window, operand 2, single buffered']
    #allocation8 [shape = 'u8[4096]{0}', space=vmem, size = 0x1000, scoped, tag = 'output window, operand 0, single buffered']
    %8 = vsyncpa [#allocation3], 0
    %9 = vsyncpa [#allocation6], 0
    %10 = vsyncpa [#allocation4], 0
    // Predicated region
    $region2: #{tpu_custom_call.1} parent=1 // pred_check
      _
    $region3: #{tpu_custom_call.1} parent=1 // pred_check_branch
      %12 = sbr.rel (0) target = $region5
    $region4: #{tpu_custom_call.1} parent=1 // pred_region
      %14 = vsyncadd [#allocation3], 0
      %s16 = sshll.u32 %s0, 4
      %s17 = int_to_ptr.hbm [resolvable:$true] %s16
      %s18 = sshll.u32 [#allocation2], 4
      %s19 = int_to_ptr.vmem [resolvable:$true] %s18
      %21 = dma.hbm_to_vmem [thread:$0]  %s17, 64, %s19, [#allocation3]
    $region5: #{tpu_custom_call.1} parent=1 // pred_fallthru
      _
    // Predicated region
    $region6: #{tpu_custom_call.1} parent=1 // pred_check
      _
    $region7: #{tpu_custom_call.1} parent=1 // pred_check_branch
      %23 = sbr.rel (0) target = $region9
    $region8: #{tpu_custom_call.1} parent=1 // pred_region
      %25 = vsyncadd [#allocation6], 0
      %s26 = sshll.u32 %s1, 4
      %s27 = int_to_ptr.hbm [resolvable:$true] %s26
      %s28 = sshll.u32 [#allocation5], 4
      %s29 = int_to_ptr.vmem [resolvable:$true] %s28
      %34 = dma.hbm_to_vmem [thread:$0]  %s27, 512, %s29, [#allocation6], 64, 64, 4
    $region9: #{tpu_custom_call.1} parent=1 // pred_fallthru
      _
    // Predicated region
    $region10: #{tpu_custom_call.1} parent=1 // pred_check
      _
    $region11: #{tpu_custom_call.1} parent=1 // pred_check_branch
      %36 = sbr.rel (0) target = $region13
    $region12: #{tpu_custom_call.1} parent=1 // pred_region
      %38 = vsyncadd [#allocation6], 0
      %s39 = sshll.u32 %s2, 4
      %s40 = int_to_ptr.hbm [resolvable:$true] %s39
      %s41 = sshll.u32 [#allocation7], 4
      %s42 = int_to_ptr.vmem [resolvable:$true] %s41
      %47 = dma.hbm_to_vmem [thread:$0]  %s40, 32, %s42, [#allocation6], 16, 16, 1
    $region13: #{tpu_custom_call.1} parent=1 // pred_fallthru
      _
    // Predicated region
    $region14: #{tpu_custom_call.1} parent=1 // pred_check
      _
    $region15: #{tpu_custom_call.1} parent=1 // pred_check_branch
      %49 = sbr.rel (0) target = $region17
    $region16: #{tpu_custom_call.1} parent=1 // pred_region
      %51 = dma.done [#allocation3], 64
    $region17: #{tpu_custom_call.1} parent=1 // pred_fallthru
      _
    // Predicated region
    $region18: #{tpu_custom_call.1} parent=1 // pred_check
      _
    $region19: #{tpu_custom_call.1} parent=1 // pred_check_branch
      %53 = sbr.rel (0) target = $region21
    $region20: #{tpu_custom_call.1} parent=1 // pred_region
      %55 = dma.done [#allocation6], 512
    $region21: #{tpu_custom_call.1} parent=1 // pred_fallthru
      _
    // Predicated region
    $region22: #{tpu_custom_call.1} parent=1 // pred_check
      _
    $region23: #{tpu_custom_call.1} parent=1 // pred_check_branch
      %57 = sbr.rel (0) target = $region25
    $region24: #{tpu_custom_call.1} parent=1 // pred_region
      %59 = dma.done [#allocation6], 32
    $region25: #{tpu_custom_call.1} parent=1 // pred_fallthru
      _
    %v61 = vld [vmem:[#allocation2] sm:$0xf]
    %v62 = vld [vmem:[#allocation5] sm:$0xf]
    %v63 = vld [vmem:[#allocation5 + $0x4] sm:$0xf]
    %v64 = vld [vmem:[#allocation5 + $0x8] sm:$0xf]
    %v65 = vld [vmem:[#allocation5 + $0xc] sm:$0xf]
    %v66 = vld [vmem:[#allocation7] sm:$0x1]
    %v68 = vperm.slane %v66, 0
    %v74 = vunpack.c.l.b16 %v62
    %v75 = vunpack.c.l.b16 %v63
    %v76 = vunpack.c.l.b16 %v64
    %v77 = vunpack.c.l.b16 %v65
    %v78 = vpack.c.b16 %v75, %v74
    %v79 = vpack.c.b16 %v77, %v76
    %vm82 = vcmask 261120
    %v84 = vsel %vm82, %v61, 0
    %86 = vmatpush.bf16.msra.mxu0 0
    %87 = vmatpush.bf16.msra.mxu0 0
    %88 = vmatpush.bf16.msra.mxu0 0
    %89 = vmatpush.bf16.msra.mxu0 0
    %90 = vmatpush.bf16.msra.mxu0 0
    %91 = vmatpush.bf16.msra.mxu0 0
    %92 = vmatpush.bf16.msra.mxu0 %v79
    %93 = vmatpush.bf16.msra.mxu0 %v78
    %94 = vmatmul.bf16.gmra.mxu0 %v84
    %v95 = vpop.f32.mrf.mxu0
    %v96 = vadd.f32 %v68, %v95
    %v97 = vpop.f32.mrf.mxu0
    %98 = vdwg.mxu0
    %s99 = scalar_lea.vmem [#allocation5], 16
    %v100 = vld [vmem:[%s99] sm:$0xf]
    %v101 = vld [vmem:[%s99 + $0x4] sm:$0xf]
    %v102 = vld [vmem:[%s99 + $0x8] sm:$0xf]
    %v103 = vld [vmem:[%s99 + $0xc] sm:$0xf]
    %s104 = scalar_lea.vmem [#allocation7], 1
    %v105 = vld [vmem:[%s104] sm:$0x1]
    %v107 = vperm.slane %v105, 0
    %v113 = vunpack.c.l.b16 %v100
    %v114 = vunpack.c.l.b16 %v101
    %v115 = vunpack.c.l.b16 %v102
    %v116 = vunpack.c.l.b16 %v103
    %v117 = vpack.c.b16 %v114, %v113
    %v118 = vpack.c.b16 %v116, %v115
    %121 = vmatpush.bf16.msra.mxu0 0
    %122 = vmatpush.bf16.msra.mxu0 0
    %123 = vmatpush.bf16.msra.mxu0 0
    %124 = vmatpush.bf16.msra.mxu0 0
    %125 = vmatpush.bf16.msra.mxu0 0
    %126 = vmatpush.bf16.msra.mxu0 0
    %127 = vmatpush.bf16.msra.mxu0 %v118
    %128 = vmatpush.bf16.msra.mxu0 %v117
    %129 = vmatmul.bf16.gmra.mxu0 %v84
    %v130 = vpop.f32.mrf.mxu0
    %v131 = vadd.f32 %v107, %v130
    %v132 = vpop.f32.mrf.mxu0
    %133 = vdwg.mxu0
    %v134 = vsub.f32 0.0, %v96
    %v135 = vmul.f32 %v134, 1.442695
    %v136 = vpow.pop %v135
    %v137 = vadd.f32 %v136, 1.0
    %v138 = vsub.f32 0.0, %v131
    %v139 = vmul.f32 %v138, 1.442695
    %v140 = vpow.pop %v139
    %v141 = vadd.f32 %v140, 1.0
    %v142 = vmul.f32 %v137, %v141
    %v143 = vrcp.pop %v142
    %144 = vst [vmem:[#allocation8] sm:$0xff] %v143
    // Predicated region
    $region26: #{tpu_custom_call.1} parent=1 // pred_check
      _
    $region27: #{tpu_custom_call.1} parent=1 // pred_check_branch
      %146 = sbr.rel (0) target = $region29
    $region28: #{tpu_custom_call.1} parent=1 // pred_region
      %148 = vsyncadd [#allocation4], 0
      %s150 = sshll.u32 [#allocation8], 4
      %s151 = int_to_ptr.vmem [resolvable:$true] %s150
      %s152 = sshll.u32 %s3, 4
      %s153 = int_to_ptr.hbm [resolvable:$true] %s152
      %155 = dma.vmem_to_hbm [thread:$0]  %s151, 128, %s153, [#allocation4]
    $region29: #{tpu_custom_call.1} parent=1 // pred_fallthru
      _
    // Predicated region
    $region30: #{tpu_custom_call.1} parent=1 // pred_check
      _
    $region31: #{tpu_custom_call.1} parent=1 // pred_check_branch
      %157 = sbr.rel (0) target = $region33
    $region32: #{tpu_custom_call.1} parent=1 // pred_region
      %159 = dma.done [#allocation4], 128
    $region33: #{tpu_custom_call.1} parent=1 // pred_fallthru
      _
    %160 = vsyncpa [#allocation3], 1
    %161 = vsyncpa [#allocation6], 1
    %162 = vsyncpa [#allocation4], 1

// kernel: tpu_custom_call.1
$region0: #{tpu_custom_call.1}
  #allocation0 [shape = 'u32[]', space=smem, size = 0x4, offset = 0x4, fixed_abs, tag = 'smem constant byte address 0x4 - core index']
  #allocation1 [shape = 'u32[72,128]{1,0:T(1,128)}', space=vmem, size = 0x9000, scoped, tag = 'internal scratch']
  %s0 = inlined_call_operand.hbm [shape: bf16[8,32], index: 0, kind: input, shape index: {}]
  %s1 = inlined_call_operand.hbm [shape: bf16[2,32,128], index: 1, kind: input, shape index: {}]
  %s2 = inlined_call_operand.hbm [shape: f32[2,1,128], index: 2, kind: input, shape index: {}]
  %s3 = inlined_call_operand.hbm [shape: f32[8,128], index: 3, kind: output, shape index: {}]
  %s4 = sld [smem:[#allocation0]]
  $region34: #{tpu_custom_call.1} parent=0
    _
  %s6 = ssub.s32 1, %s4
  %s7 = scalar_select 0, %s6, %s4
  $region1: #{tpu_custom_call.1} parent=0
    #allocation2 [shape = 'u8[2048]{0}', space=vmem, size = 0x800, scoped, tag = 'input window, operand 0, single buffered']
    #allocation3 [shape = 's32[1]{0}', space=sflag, size = 0x4, scoped, tag = 'scoped memory for tpu_custom_call.1']
    #allocation4 [shape = 's32[1]{0}', space=sflag, size = 0x4, scoped, tag = 'scoped memory for tpu_custom_call.1']
    #allocation5 [shape = 'u8[16384]{0}', space=vmem, size = 0x4000, scoped, tag = 'input window, operand 1, single buffered']
    #allocation6 [shape = 's32[1]{0}', space=sflag, size = 0x4, scoped, tag = 'scoped memory for tpu_custom_call.1']
    #allocation7 [shape = 'u8[1024]{0}', space=vmem, size = 0x400, scoped, tag = 'input window, operand 2, single buffered']
    #allocation8 [shape = 'u8[4096]{0}', space=vmem, size = 0x1000, scoped, tag = 'output window, operand 0, single buffered']
    %8 = vsyncpa [#allocation3], 0
    %9 = vsyncpa [#allocation6], 0
    %10 = vsyncpa [#allocation4], 0
    // Predicated region
    $region2: #{tpu_custom_call.1} parent=1 // pred_check
      _
    $region3: #{tpu_custom_call.1} parent=1 // pred_check_branch
      %12 = sbr.rel (0) target = $region5
    $region4: #{tpu_custom_call.1} parent=1 // pred_region
      %14 = vsyncadd [#allocation3], 0
      %s16 = sshll.u32 %s0, 4
      %s17 = int_to_ptr.hbm [resolvable:$true] %s16
      %s18 = sshll.u32 [#allocation2], 4
      %s19 = int_to_ptr.vmem [resolvable:$true] %s18
      %21 = dma.hbm_to_vmem [thread:$0]  %s17, 64, %s19, [#allocation3]
    $region5: #{tpu_custom_call.1} parent=1 // pred_fallthru
      _
    // Predicated region
    $region6: #{tpu_custom_call.1} parent=1 // pred_check
      _
    $region7: #{tpu_custom_call.1} parent=1 // pred_check_branch
      %23 = sbr.rel (0) target = $region9
    $region8: #{tpu_custom_call.1} parent=1 // pred_region
      %25 = vsyncadd [#allocation6], 0
      %s26 = sshll.u32 %s1, 4
      %s27 = int_to_ptr.hbm [resolvable:$true] %s26
      %s28 = sshll.u32 [#allocation5], 4
      %s29 = int_to_ptr.vmem [resolvable:$true] %s28
      %34 = dma.hbm_to_vmem [thread:$0]  %s27, 512, %s29, [#allocation6], 64, 64, 4
    $region9: #{tpu_custom_call.1} parent=1 // pred_fallthru
      _
    // Predicated region
    $region10: #{tpu_custom_call.1} parent=1 // pred_check
      _
    $region11: #{tpu_custom_call.1} parent=1 // pred_check_branch
      %36 = sbr.rel (0) target = $region13
    $region12: #{tpu_custom_call.1} parent=1 // pred_region
      %38 = vsyncadd [#allocation6], 0
      %s39 = sshll.u32 %s2, 4
      %s40 = int_to_ptr.hbm [resolvable:$true] %s39
      %s41 = sshll.u32 [#allocation7], 4
      %s42 = int_to_ptr.vmem [resolvable:$true] %s41
      %47 = dma.hbm_to_vmem [thread:$0]  %s40, 32, %s42, [#allocation6], 16, 16, 1
    $region13: #{tpu_custom_call.1} parent=1 // pred_fallthru
      _
    // Predicated region
    $region14: #{tpu_custom_call.1} parent=1 // pred_check
      _
    $region15: #{tpu_custom_call.1} parent=1 // pred_check_branch
      %49 = sbr.rel (0) target = $region17
    $region16: #{tpu_custom_call.1} parent=1 // pred_region
      %51 = dma.done [#allocation3], 64
    $region17: #{tpu_custom_call.1} parent=1 // pred_fallthru
      _
    // Predicated region
    $region18: #{tpu_custom_call.1} parent=1 // pred_check
      _
    $region19: #{tpu_custom_call.1} parent=1 // pred_check_branch
      %53 = sbr.rel (0) target = $region21
    $region20: #{tpu_custom_call.1} parent=1 // pred_region
      %55 = dma.done [#allocation6], 512
    $region21: #{tpu_custom_call.1} parent=1 // pred_fallthru
      _
    // Predicated region
    $region22: #{tpu_custom_call.1} parent=1 // pred_check
      _
    $region23: #{tpu_custom_call.1} parent=1 // pred_check_branch
      %57 = sbr.rel (0) target = $region25
    $region24: #{tpu_custom_call.1} parent=1 // pred_region
      %59 = dma.done [#allocation6], 32
    $region25: #{tpu_custom_call.1} parent=1 // pred_fallthru
      _
    %v61 = vld [vmem:[#allocation2] sm:$0xf]
    %v62 = vld [vmem:[#allocation5] sm:$0xf]
    %v63 = vld [vmem:[#allocation5 + $0x4] sm:$0xf]
    %v64 = vld [vmem:[#allocation5 + $0x8] sm:$0xf]
    %v65 = vld [vmem:[#allocation5 + $0xc] sm:$0xf]
    %v66 = vld [vmem:[#allocation7] sm:$0x1]
    %v68 = vperm.slane %v66, 0
    %v74 = vunpack.c.l.b16 %v62
    %v75 = vunpack.c.l.b16 %v63
    %v76 = vunpack.c.l.b16 %v64
    %v77 = vunpack.c.l.b16 %v65
    %v78 = vpack.c.b16 %v75, %v74
    %v79 = vpack.c.b16 %v77, %v76
    %vm82 = vcmask 261120
    %v84 = vsel %vm82, %v61, 0
    %86 = vmatpush.bf16.msra.mxu0 0
    %87 = vmatpush.bf16.msra.mxu0 0
    %88 = vmatpush.bf16.msra.mxu0 0
    %89 = vmatpush.bf16.msra.mxu0 0
    %90 = vmatpush.bf16.msra.mxu0 0
    %91 = vmatpush.bf16.msra.mxu0 0
    %92 = vmatpush.bf16.msra.mxu0 %v79
    %93 = vmatpush.bf16.msra.mxu0 %v78
    %94 = vmatmul.bf16.gmra.mxu0 %v84
    %v95 = vpop.f32.mrf.mxu0
    %v96 = vadd.f32 %v68, %v95
    %v97 = vpop.f32.mrf.mxu0
    %98 = vdwg.mxu0
    %s99 = scalar_lea.vmem [#allocation5], 16
    %v100 = vld [vmem:[%s99] sm:$0xf]
    %v101 = vld [vmem:[%s99 + $0x4] sm:$0xf]
    %v102 = vld [vmem:[%s99 + $0x8] sm:$0xf]
    %v103 = vld [vmem:[%s99 + $0xc] sm:$0xf]
    %s104 = scalar_lea.vmem [#allocation7], 1
    %v105 = vld [vmem:[%s104] sm:$0x1]
    %v107 = vperm.slane %v105, 0
    %v113 = vunpack.c.l.b16 %v100
    %v114 = vunpack.c.l.b16 %v101
    %v115 = vunpack.c.l.b16 %v102
    %v116 = vunpack.c.l.b16 %v103
    %v117 = vpack.c.b16 %v114, %v113
    %v118 = vpack.c.b16 %v116, %v115
    %121 = vmatpush.bf16.msra.mxu0 0
    %122 = vmatpush.bf16.msra.mxu0 0
    %123 = vmatpush.bf16.msra.mxu0 0
    %124 = vmatpush.bf16.msra.mxu0 0
    %125 = vmatpush.bf16.msra.mxu0 0
    %126 = vmatpush.bf16.msra.mxu0 0
    %127 = vmatpush.bf16.msra.mxu0 %v118
    %128 = vmatpush.bf16.msra.mxu0 %v117
    %129 = vmatmul.bf16.gmra.mxu0 %v84
    %v130 = vpop.f32.mrf.mxu0
    %v131 = vadd.f32 %v107, %v130
    %v132 = vpop.f32.mrf.mxu0
    %133 = vdwg.mxu0
    %v134 = vsub.f32 0.0, %v96
    %v135 = vmul.f32 %v134, 1.442695
    %v136 = vpow.pop %v135
    %v137 = vadd.f32 %v136, 1.0
    %v138 = vsub.f32 0.0, %v131
    %v139 = vmul.f32 %v138, 1.442695
    %v140 = vpow.pop %v139
    %v141 = vadd.f32 %v140, 1.0
    %v142 = vmul.f32 %v137, %v141
    %v143 = vrcp.pop %v142
    %144 = vst [vmem:[#allocation8] sm:$0xff] %v143
    // Predicated region
    $region26: #{tpu_custom_call.1} parent=1 // pred_check
      _
    $region27: #{tpu_custom_call.1} parent=1 // pred_check_branch
      %146 = sbr.rel (0) target = $region29
    $region28: #{tpu_custom_call.1} parent=1 // pred_region
      %148 = vsyncadd [#allocation4], 0
      %s150 = sshll.u32 [#allocation8], 4
      %s151 = int_to_ptr.vmem [resolvable:$true] %s150
      %s152 = sshll.u32 %s3, 4
      %s153 = int_to_ptr.hbm [resolvable:$true] %s152
      %155 = dma.vmem_to_hbm [thread:$0]  %s151, 128, %s153, [#allocation4]
    $region29: #{tpu_custom_call.1} parent=1 // pred_fallthru
      _
    // Predicated region
    $region30: #{tpu_custom_call.1} parent=1 // pred_check
      _
    $region31: #{tpu_custom_call.1} parent=1 // pred_check_branch
      %157 = sbr.rel (0) target = $region33
    $region32: #{tpu_custom_call.1} parent=1 // pred_region
      %159 = dma.done [#allocation4], 128
    $region33: #{tpu_custom_call.1} parent=1 // pred_fallthru
      _
    %160 = vsyncpa [#allocation3], 1
    %161 = vsyncpa [#allocation6], 1
    %162 = vsyncpa [#allocation4], 1

</llo_original>
